<compile_context>
chip_gen: v5e
topology: v5e:2x2
jax: 0.10.0
libtpu: 0.0.40
codegen_flags: <defaults>
</compile_context>

<pallas_src>
import functools

import jax
import jax.numpy as jnp
from jax.experimental import pallas as pl
from jax.experimental.pallas import tpu as pltpu

_SUBLANES = 8
_LANES = 128
_MAX_TB = 2048  # keep lane-padded (TB,1) scratch/output buffers small


def _round_up(x: int, m: int) -> int:
    return ((x + m - 1) // m) * m


def _cdiv(a: int, b: int) -> int:
    return (a + b - 1) // b


@functools.lru_cache(maxsize=1)
def _vmem_capacity_bytes() -> int:
    try:
        return int(pltpu.get_tpu_info().vmem_capacity_bytes)
    except Exception:
        # Conservative fallback: v7x has the smallest VMEM (64 MiB per core).
        return 64 * 1024 * 1024


def _ae_batch_kernel(est_ref, gt_ref, out_ref, acc_ref, *,
                     d, td, kt_per_split, need_mask):
    # est_ref/gt_ref: (TB, TD) tile. acc_ref: (TB, 1) f32 running signed sum
    # for the current (batch tile, split) output block.
    # Grid = (batch_tiles, n_splits, kt_per_split); axis 2 is the sequential
    # reduction axis.
    k = pl.program_id(2)

    @pl.when(k == 0)
    def _():
        acc_ref[...] = jnp.zeros_like(acc_ref)

    diff = est_ref[...].astype(jnp.float32) - gt_ref[...].astype(jnp.float32)

    if need_mask:
        # Zero lanes whose logical column is past the true reduction length d
        # (ragged last tile / clamped duplicate tiles contain stale data).
        s = pl.program_id(1)
        base = (s * kt_per_split + k) * td
        col = jax.lax.broadcasted_iota(jnp.int32, diff.shape, dimension=1)
        diff = jnp.where(col + base < d, diff, 0.0)

    acc_ref[...] += jnp.sum(diff, axis=-1, keepdims=True)

    @pl.when(k == pl.num_programs(2) - 1)
    def _():
        # Signed partial sum; abs (and the cross-split sum) happen in the
        # wrapper so splitting the reduction stays exact.
        out_ref[...] = acc_ref[...].reshape(out_ref.shape)


@jax.jit
def ae_batch(estimated_density_map: jax.Array, gt_map: jax.Array) -> jax.Array:
    """Pallas equivalent of AEBatch.forward. Inputs NCHW, output shape (N,)."""
    assert estimated_density_map.shape == gt_map.shape
    n, c, h, w = estimated_density_map.shape
    d = c * h * w
    in_dtype = estimated_density_map.dtype
    itemsize = jnp.dtype(in_dtype).itemsize

    est2d = estimated_density_map.reshape(n, d)
    gt2d = gt_map.reshape(n, d)

    # --- generation-aware VMEM / tile budget --------------------------------
    vmem_cap = _vmem_capacity_bytes()
    # ~65% of physical VMEM for the (2 inputs x 2 pipeline buffers) working set.
    working_budget = int(vmem_cap * 0.65)
    per_tile_budget = working_budget // 4           # per input, per buffer

    # --- tile sizes ----------------------------------------------------------
    tb = max(_SUBLANES, 32 // max(itemsize, 1))      # sublane pack: 8 f32, 16 bf16
    d_aligned = _round_up(d, _LANES)
    td_cap = max(_LANES,
                 ((per_tile_budget // (tb * itemsize)) // _LANES) * _LANES)
    td = min(d_aligned, td_cap)

    if td >= d_aligned:
        # One D tile covers the whole row: spend the remaining budget on batch
        # rows, but keep ~8 batch grid steps (pipeline depth + megacore) and
        # cap TB so the lane-padded (TB,1) buffers stay negligible.
        td = d_aligned
        tb_budget = max(tb, ((per_tile_budget // (td * itemsize))
                             // _SUBLANES) * _SUBLANES)
        tb_target = _round_up(max(1, _cdiv(n, 8)), tb)
        tb = max(tb, min(tb_budget, tb_target, _MAX_TB))

    kt_total = _cdiv(d, td)
    batch_tiles = _cdiv(n, tb)

    # If the batch axis alone cannot feed both v7x TensorCores, split the D
    # reduction across a second parallel axis and combine partials outside.
    n_splits = 2 if (batch_tiles < 4 and kt_total >= 2) else 1
    kt_per_split = _cdiv(kt_total, n_splits)

    need_clamp = n_splits * kt_per_split > kt_total
    need_mask = (d % td != 0) or need_clamp

    if need_clamp:
        def in_index_map(i, s, k):
            # Duplicate (clamped) tiles are fully zeroed by the in-kernel mask.
            return (i, jnp.minimum(s * kt_per_split + k, kt_total - 1))
    else:
        def in_index_map(i, s, k):
            return (i, s * kt_per_split + k)

    grid = (batch_tiles, n_splits, kt_per_split)

    kernel = functools.partial(
        _ae_batch_kernel, d=d, td=td,
        kt_per_split=kt_per_split, need_mask=need_mask)

    partials = pl.pallas_call(
        kernel,
        out_shape=jax.ShapeDtypeStruct((n_splits, n, 1), jnp.float32),
        grid_spec=pltpu.PrefetchScalarGridSpec(
            num_scalar_prefetch=0,
            grid=grid,
            in_specs=[
                pl.BlockSpec((tb, td), in_index_map),
                pl.BlockSpec((tb, td), in_index_map),
            ],
            out_specs=pl.BlockSpec((1, tb, 1), lambda i, s, k: (s, i, 0)),
            scratch_shapes=[pltpu.VMEM((tb, 1), jnp.float32)],
        ),
        compiler_params=pltpu.CompilerParams(
            dimension_semantics=("parallel", "parallel", "arbitrary"),
            vmem_limit_bytes=int(min(vmem_cap - 2 * 1024 * 1024,
                                     working_budget + 16 * 1024 * 1024)),
        ),
        cost_estimate=pl.CostEstimate(
            flops=2 * n * d,
            transcendentals=0,
            bytes_accessed=2 * n * d * itemsize + n * n_splits * 4,
        ),
    )(est2d, gt2d)

    # abs(sum over D) == abs(sum over split partials); dtype follows the input
    # dtype, matching torch (f32 accumulation is at least as accurate).
    out = jnp.abs(jnp.sum(partials[:, :, 0], axis=0))
    return out.astype(in_dtype)


if __name__ == "__main__":
    key = jax.random.PRNGKey(0)
    k1, k2 = jax.random.split(key)
    # SMALL shapes: batch=2, channels=4, spatial=16x16 (NCHW, like PyTorch)
    est = jax.random.normal(k1, (2, 4, 16, 16), dtype=jnp.float32)
    gt = jax.random.normal(k2, (2, 4, 16, 16), dtype=jnp.float32)

    result = ae_batch(est, gt)
    jax.block_until_ready(result)

    # Reference check in plain JAX (same math as torch.abs(torch.sum(...)))
    ref = jnp.abs(jnp.sum(est - gt, axis=(1, 2, 3)))
    assert result.shape == (2,)
    assert jnp.allclose(result, ref, rtol=1e-5, atol=1e-5)

    print("KERNEL_OK")
</pallas_src>

<mosaic_0001>
module attributes {stable_mosaic.version = 11 : i64} {
  func.func @_ae_batch_kernel(%arg0: i32, %arg1: i32, %arg2: i32, %arg3: memref<8x1024xf32, #tpu.memory_space<vmem>>, %arg4: memref<8x1024xf32, #tpu.memory_space<vmem>>, %arg5: memref<1x8x1xf32, #tpu.memory_space<vmem>>, %arg6: memref<8x1xf32, #tpu.memory_space<vmem>>) attributes {dimension_semantics = [#tpu.dimension_semantics<parallel>, #tpu.dimension_semantics<parallel>, #tpu.dimension_semantics<arbitrary>], iteration_bounds = array<i64: 1, 1, 1>, scalar_prefetch = 0 : i64, scratch_operands = 1 : i64, tpu.core_type = #tpu.core_type<tc>, window_params = [{transform_indices = @transform_0, window_bounds = array<i64: 8, 1024>}, {transform_indices = @transform_1, window_bounds = array<i64: 8, 1024>}, {transform_indices = @transform_2, window_bounds = array<i64: 1, 8, 1>}]} {
    %c0_i32 = arith.constant 0 : i32
    %0 = arith.cmpi eq, %arg2, %c0_i32 : i32
    %1 = arith.extui %0 : i1 to i32
    %c0_i32_0 = arith.constant 0 : i32
    %2 = arith.cmpi ne, %1, %c0_i32_0 : i32
    scf.if %2 {
      %cst_10 = arith.constant 0.000000e+00 : f32
      %14 = vector.broadcast %cst_10 : f32 to vector<8x1xf32>
      %c0_11 = arith.constant 0 : index
      %c0_12 = arith.constant 0 : index
      %15 = vector.load %arg6[%c0_11, %c0_12] : memref<8x1xf32, #tpu.memory_space<vmem>>, vector<8x1xf32>
      tpu.vector_store %arg6[%c0_11, %c0_12], %14 {strides = array<i32>} : memref<8x1xf32, #tpu.memory_space<vmem>>, vector<8x1xf32>,
    } else {
    }
    %c0 = arith.constant 0 : index
    %c0_1 = arith.constant 0 : index
    %3 = vector.load %arg3[%c0, %c0_1] : memref<8x1024xf32, #tpu.memory_space<vmem>>, vector<8x1024xf32>
    %c0_2 = arith.constant 0 : index
    %c0_3 = arith.constant 0 : index
    %4 = vector.load %arg4[%c0_2, %c0_3] : memref<8x1024xf32, #tpu.memory_space<vmem>>, vector<8x1024xf32>
    %5 = arith.subf %3, %4 : vector<8x1024xf32>
    %c0_4 = arith.constant 0 : index
    %c0_5 = arith.constant 0 : index
    %6 = vector.load %arg6[%c0_4, %c0_5] : memref<8x1xf32, #tpu.memory_space<vmem>>, vector<8x1xf32>
    %cst = arith.constant dense<0.000000e+00> : vector<8xf32>
    %7 = vector.multi_reduction <add>, %5, %cst [1] : vector<8x1024xf32> to vector<8xf32>
    %8 = vector.shape_cast %7 : vector<8xf32> to vector<8x1xf32>
    %9 = arith.addf %6, %8 : vector<8x1xf32>
    %c0_6 = arith.constant 0 : index
    %c0_7 = arith.constant 0 : index
    %10 = vector.load %arg6[%c0_6, %c0_7] : memref<8x1xf32, #tpu.memory_space<vmem>>, vector<8x1xf32>
    tpu.vector_store %arg6[%c0_6, %c0_7], %9 {strides = array<i32>} : memref<8x1xf32, #tpu.memory_space<vmem>>, vector<8x1xf32>,
    %c0_i32_8 = arith.constant 0 : i32
    %11 = arith.cmpi eq, %arg2, %c0_i32_8 : i32
    %12 = arith.extui %11 : i1 to i32
    %c0_i32_9 = arith.constant 0 : i32
    %13 = arith.cmpi ne, %12, %c0_i32_9 : i32
    scf.if %13 {
      %c0_10 = arith.constant 0 : index
      %c0_11 = arith.constant 0 : index
      %14 = vector.load %arg6[%c0_10, %c0_11] : memref<8x1xf32, #tpu.memory_space<vmem>>, vector<8x1xf32>
      %15 = vector.shape_cast %14 : vector<8x1xf32> to vector<1x8x1xf32>
      %c0_12 = arith.constant 0 : index
      %c0_13 = arith.constant 0 : index
      %c0_14 = arith.constant 0 : index
      %16 = vector.load %arg5[%c0_12, %c0_13, %c0_14] : memref<1x8x1xf32, #tpu.memory_space<vmem>>, vector<1x8x1xf32>
      tpu.vector_store %arg5[%c0_12, %c0_13, %c0_14], %15 {strides = array<i32>} : memref<1x8x1xf32, #tpu.memory_space<vmem>>, vector<1x8x1xf32>,
    } else {
    }
    return
  }
  func.func @transform_0(%arg0: i32, %arg1: i32, %arg2: i32) -> (i32, i32) {
    %c1_i32 = arith.constant 1 : i32
    %0 = arith.muli %arg1, %c1_i32 : i32
    %1 = arith.addi %0, %arg2 : i32
    %c0_i32 = arith.constant 0 : i32
    return %arg0, %1 : i32, i32
  }
  func.func @transform_1(%arg0: i32, %arg1: i32, %arg2: i32) -> (i32, i32) {
    %c1_i32 = arith.constant 1 : i32
    %0 = arith.muli %arg1, %c1_i32 : i32
    %1 = arith.addi %0, %arg2 : i32
    %c0_i32 = arith.constant 0 : i32
    return %arg0, %1 : i32, i32
  }
  func.func @transform_2(%arg0: i32, %arg1: i32, %arg2: i32) -> (i32, i32, i32) {
    %c0_i32 = arith.constant 0 : i32
    %c0_i32_0 = arith.constant 0 : i32
    return %arg1, %arg0, %c0_i32 : i32, i32, i32
  }
}

</mosaic_0001>

<llo_original>
// kernel: ae_batch.1
$region0: #{ae_batch.1}
  #allocation0 [shape = 'u32[]', space=smem, size = 0x4, offset = 0x4, fixed_abs, tag = 'smem constant byte address 0x4 - core index']
  #allocation1 [shape = 'u32[72,128]{1,0:T(1,128)}', space=vmem, size = 0x9000, scoped, tag = 'internal scratch']
  #allocation2 [shape = 'f32[8,1]{1,0:T(8,128)}', space=vmem, size = 0x1000, scoped, tag = 'scratch operand']
  %s0 = inlined_call_operand.vmem [shape: f32[2,1024], index: 0, kind: input, shape index: {}]
  %s1 = inlined_call_operand.vmem [shape: f32[2,1024], index: 1, kind: input, shape index: {}]
  %s2 = inlined_call_operand.vmem [shape: f32[1,2,1], index: 2, kind: output, shape index: {}]
  %s3 = sld [smem:[#allocation0]]
  $region56: #{ae_batch.1} parent=0
    _
  %s5 = ssub.s32 1, %s3
  %s6 = scalar_select 0, %s5, %s3
  $region1: #{ae_batch.1} parent=0
    #allocation3 [shape = 'u8[4096]{0}', space=vmem, size = 0x1000, scoped, tag = 'output window, operand 0, single buffered']
    // Predicated region
    $region2: #{ae_batch.1} parent=1 // pred_check
      _
    $region3: #{ae_batch.1} parent=1 // pred_check_branch
      %8 = sbr.rel (0) target = $region5
    $region4: #{ae_batch.1} parent=1 // pred_region
      %s9 = sadd.s32 0, 0
      %s10 = smul.u32 8, %s9
      %p11 = scmp.lt.s32.totalorder %s10, 7
      %s12 = scalar_select %p11, %s10, 7
      %s13 = smul.addr %s12, 2
      %s14 = scalar_lea.vmem %s0, %s13
      %s15 = sadd.s32 0, 0
      %s16 = smul.u32 8, %s15
    $region5: #{ae_batch.1} parent=1 // pred_fallthru
      _
    // Predicated region
    $region6: #{ae_batch.1} parent=1 // pred_check
      _
    $region7: #{ae_batch.1} parent=1 // pred_check_branch
      %18 = sbr.rel (0) target = $region9
    $region8: #{ae_batch.1} parent=1 // pred_region
      %s19 = sadd.s32 0, 0
      %s20 = smul.u32 8, %s19
      %p21 = scmp.lt.s32.totalorder %s20, 7
      %s22 = scalar_select %p21, %s20, 7
      %s23 = smul.addr %s22, 2
      %s24 = scalar_lea.vmem %s1, %s23
      %s25 = sadd.s32 0, 0
      %s26 = smul.u32 8, %s25
    $region9: #{ae_batch.1} parent=1 // pred_fallthru
      _
    %s27 = sadd.s32 0, 0
    %s28 = smul.u32 8, %s27
    %p29 = scmp.lt.s32.totalorder %s28, 7
    %s30 = scalar_select %p29, %s28, 7
    %s31 = smul.addr %s30, 2
    %s32 = scalar_lea.vmem %s0, %s31
    %s33 = sadd.s32 0, 0
    %s34 = smul.u32 8, %s33
    %p35 = scmp.lt.s32.totalorder %s34, 7
    %s36 = scalar_select %p35, %s34, 7
    %s37 = smul.addr %s36, 2
    %s38 = scalar_lea.vmem %s1, %s37
    %s39 = sadd.s32 0, 0
    %s40 = smul.u32 8, %s39
    %p41 = scmp.lt.s32.totalorder %s40, 7
    %s42 = scalar_select %p41, %s40, 7
    %s43 = smul.addr %s42, 2
    %s44 = scalar_lea.vmem %s0, %s43
    %s45 = sadd.s32 0, 0
    %s46 = smul.u32 8, %s45
    %s47 = sadd.s32 0, 0
    %s48 = smul.u32 8, %s47
    %p49 = scmp.lt.s32.totalorder %s48, 7
    %s50 = scalar_select %p49, %s48, 7
    %s51 = smul.addr %s50, 2
    %s52 = scalar_lea.vmem %s1, %s51
    %s53 = sadd.s32 0, 0
    %s54 = smul.u32 8, %s53
    %p55 = scmp.eq.s32.totalorder 0, 0
    // Predicated region
    $region10: #{ae_batch.1} parent=1 // pred_check
      %p56 = pneg %p55
    $region11: #{ae_batch.1} parent=1 // pred_check_branch
      %58 = sbr.rel (%p56) target = $region13
    $region12: #{ae_batch.1} parent=1 // pred_region
      %vm59 = vcmask 7168
      %60 = vst.msk [vmem:[#allocation2] sm:$0xff] %vm59, 0.0
    $region13: #{ae_batch.1} parent=1 // pred_fallthru
      _
    %v61 = vld [vmem:[%s44] sm:$0xff]
    %v62 = vld [vmem:[%s44 + $0x8] sm:$0xff]
    %v63 = vld [vmem:[%s44 + $0x10] sm:$0xff]
    %v64 = vld [vmem:[%s44 + $0x18] sm:$0xff]
    %v65 = vld [vmem:[%s44 + $0x20] sm:$0xff]
    %v66 = vld [vmem:[%s44 + $0x28] sm:$0xff]
    %v67 = vld [vmem:[%s44 + $0x30] sm:$0xff]
    %v68 = vld [vmem:[%s44 + $0x38] sm:$0xff]
    %v69 = vld [vmem:[%s52] sm:$0xff]
    %v70 = vld [vmem:[%s52 + $0x8] sm:$0xff]
    %v71 = vld [vmem:[%s52 + $0x10] sm:$0xff]
    %v72 = vld [vmem:[%s52 + $0x18] sm:$0xff]
    %v73 = vld [vmem:[%s52 + $0x20] sm:$0xff]
    %v74 = vld [vmem:[%s52 + $0x28] sm:$0xff]
    %v75 = vld [vmem:[%s52 + $0x30] sm:$0xff]
    %v76 = vld [vmem:[%s52 + $0x38] sm:$0xff]
    %v77 = vsub.f32 %v61, %v69
    %v78 = vsub.f32 %v62, %v70
    %v79 = vsub.f32 %v63, %v71
    %v80 = vsub.f32 %v64, %v72
    %v81 = vsub.f32 %v65, %v73
    %v82 = vsub.f32 %v66, %v74
    %v83 = vsub.f32 %v67, %v75
    %v84 = vsub.f32 %v68, %v76
    %v85 = vld [vmem:[#allocation2] sm:$0xff]
    %94 = vst [vmem:[#allocation1] ss:$4 sm:$0xff] %v77
    %s95 = scalar_lea.vmem [#allocation1], 1
    %96 = vst [vmem:[%s95] ss:$4 sm:$0xff] %v79
    %s97 = scalar_lea.vmem [#allocation1], 2
    %98 = vst [vmem:[%s97] ss:$4 sm:$0xff] %v81
    %s99 = scalar_lea.vmem [#allocation1], 3
    %100 = vst [vmem:[%s99] ss:$4 sm:$0xff] %v83
    %s101 = scalar_lea.vmem [#allocation1], 32
    %102 = vst [vmem:[%s101] ss:$4 sm:$0xff] %v78
    %s103 = scalar_lea.vmem [#allocation1], 33
    %104 = vst [vmem:[%s103] ss:$4 sm:$0xff] %v80
    %s105 = scalar_lea.vmem [#allocation1], 34
    %106 = vst [vmem:[%s105] ss:$4 sm:$0xff] %v82
    %s107 = scalar_lea.vmem [#allocation1], 35
    %108 = vst [vmem:[%s107] ss:$4 sm:$0xff] %v84
    %v109 = vld.sshfl [vmem:[#allocation1] sm:$0xff pattern:$0x73625140]
    %v110 = vld.sshfl [vmem:[#allocation1 + $0x8] sm:$0xff pattern:$0x73625140]
    %v111 = vld.sshfl [vmem:[#allocation1 + $0x10] sm:$0xff pattern:$0x73625140]
    %v112 = vld.sshfl [vmem:[#allocation1 + $0x18] sm:$0xff pattern:$0x73625140]
    %v113 = vld.sshfl [vmem:[#allocation1 + $0x20] sm:$0xff pattern:$0x73625140]
    %v114 = vld.sshfl [vmem:[#allocation1 + $0x28] sm:$0xff pattern:$0x73625140]
    %v115 = vld.sshfl [vmem:[#allocation1 + $0x30] sm:$0xff pattern:$0x73625140]
    %v116 = vld.sshfl [vmem:[#allocation1 + $0x38] sm:$0xff pattern:$0x73625140]
    %v125 = vadd.f32 %v109, %v110
    %v126 = vadd.f32 %v125, %v111
    %v127 = vadd.f32 %v126, %v112
    %v128 = vadd.f32 %v127, %v113
    %v129 = vadd.f32 %v128, %v114
    %v130 = vadd.f32 %v129, %v115
    %v131 = vadd.f32 %v130, %v116
    %132 = vadd.xlane.f32.xlu0 %v131
    %v133 = vpop.xlane.xlu0 %132
    %v134 = vadd.f32 %v85, %v133
    %vm135 = vcmask 7168
    %136 = vst.msk [vmem:[#allocation2] sm:$0xff] %vm135, %v134
    // Predicated region
    $region14: #{ae_batch.1} parent=1 // pred_check
      %p137 = pneg %p55
    $region15: #{ae_batch.1} parent=1 // pred_check_branch
      %139 = sbr.rel (%p137) target = $region17
    $region16: #{ae_batch.1} parent=1 // pred_region
      %v140 = vld [vmem:[#allocation2] sm:$0xff]
      %141 = vst.msk [vmem:[#allocation3] sm:$0xff] %vm135, %v140
    $region17: #{ae_batch.1} parent=1 // pred_fallthru
      _
    // Predicated region
    $region18: #{ae_batch.1} parent=1 // pred_check
      _
    $region19: #{ae_batch.1} parent=1 // pred_check_branch
      %143 = sbr.rel (0) target = $region21
    $region20: #{ae_batch.1} parent=1 // pred_region
      // Predicated region
      $region22: #{ae_batch.1} parent=20 // pred_check
        _
      $region23: #{ae_batch.1} parent=20 // pred_check_branch
        %145 = sbr.rel (0) target = $region25
      $region24: #{ae_batch.1} parent=20 // pred_region
        // Predicated region
        $region26: #{ae_batch.1} parent=24 // pred_check
          _
        $region27: #{ae_batch.1} parent=24 // pred_check_branch
          %147 = sbr.rel target = $region29
        $region28: #{ae_batch.1} parent=24 // pred_region
          // Predicated region
          $region41: #{ae_batch.1} parent=28 // pred_check
            _
          $region42: #{ae_batch.1} parent=28 // pred_check_branch
            %163 = sbr.rel (0) target = $region44
          $region43: #{ae_batch.1} parent=28 // pred_region
            %s165 = ssub.s32 4, 1
            loop: start=0, step=1, limit=1
            $region45: #{ae_batch.1} parent=43 // loop_pre_header
              _
            $region46: #{ae_batch.1} parent=43 // loop_header
              %s167 = sphi 0, %s171
              %p168 = scmp.ge.s32.totalorder %s167, 1
              %s172 = sphi [#allocation3], [#allocation3]
              %s173 = sphi %s2, %s2
            $region47: #{ae_batch.1} parent=43 // loop_header_branch
              %170 = sbr.rel (%p168) target = $region51
            $region48: #{ae_batch.1} parent=43 // loop_body
              %v174 = vld [vmem:[%s172] sm:%s165]
              %175 = vst [vmem:[%s173] sm:%s165] %v174
            $region49: #{ae_batch.1} parent=43 // loop_footer
              %s171 = sadd.s32 1, %s167
            $region50: #{ae_batch.1} parent=43 // loop_footer_branch
              %166 = sbr.rel target = $region46
            $region51: #{ae_batch.1} parent=43 // loop_exit
              _
          $region44: #{ae_batch.1} parent=28 // pred_fallthru
            _
        $region29: #{ae_batch.1} parent=24 // pred_fallthru
          _
        // Predicated region
        $region30: #{ae_batch.1} parent=24 // pred_check
          _
        $region31: #{ae_batch.1} parent=24 // pred_check_branch
          %149 = sbr.rel (0) target = $region33
        $region32: #{ae_batch.1} parent=24 // pred_region
          %s151 = ssub.s32 4, 1
          loop: start=0, step=1, limit=1
          $region34: #{ae_batch.1} parent=32 // loop_pre_header
            _
          $region35: #{ae_batch.1} parent=32 // loop_header
            %s153 = sphi 0, %s157
            %p154 = scmp.ge.s32.totalorder %s153, 1
            %s158 = sphi [#allocation3], [#allocation3]
            %s159 = sphi %s2, %s2
          $region36: #{ae_batch.1} parent=32 // loop_header_branch
            %156 = sbr.rel (%p154) target = $region40
          $region37: #{ae_batch.1} parent=32 // loop_body
            %v160 = vld [vmem:[%s158] sm:%s151]
            %161 = vst [vmem:[%s159] sm:%s151] %v160
          $region38: #{ae_batch.1} parent=32 // loop_footer
            %s157 = sadd.s32 1, %s153
          $region39: #{ae_batch.1} parent=32 // loop_footer_branch
            %152 = sbr.rel target = $region35
          $region40: #{ae_batch.1} parent=32 // loop_exit
            _
        $region33: #{ae_batch.1} parent=24 // pred_fallthru
          _
      $region25: #{ae_batch.1} parent=20 // pred_fallthru
        _
      %176 = vnop
    $region21: #{ae_batch.1} parent=1 // pred_fallthru
      _
    // Predicated region
    $region52: #{ae_batch.1} parent=1 // pred_check
      _
    $region53: #{ae_batch.1} parent=1 // pred_check_branch
      %178 = sbr.rel (0) target = $region55
    $region54: #{ae_batch.1} parent=1 // pred_region
      _
    $region55: #{ae_batch.1} parent=1 // pred_fallthru
      _

</llo_original>
